<compile_context>
chip_gen: v7x
topology: tpu7x:2x2x1
jax: 0.10.0
libtpu: 0.0.40
codegen_flags: <defaults>
</compile_context>

<pallas_src>
import jax
import jax.numpy as jnp
from jax.experimental import pallas as pl
from jax.experimental.pallas import tpu as pltpu


def se_gate_kernel(w_ref, b_ref, s_ref, x_ref, o_ref):
    # Gate path in f32 regardless of parameter/input dtype.
    w = w_ref[...].astype(jnp.float32)          # [Ct, C_in]
    s = s_ref[...].astype(jnp.float32)          # [1, C_in]
    b = b_ref[...].astype(jnp.float32)          # [Ct, 1]
    # 1x1 conv on a [1, C_in, 1, 1] input == per-output-channel dot.
    # With N=1 / K=56 the MXU would be <0.1% utilized, so use the VPU
    # (broadcast multiply) + XLU (lane reduction) instead — both off the
    # critical DMA path and free of MXU/MRF prologue latency.
    gate = jnp.sum(w * s, axis=-1, keepdims=True) + b    # [Ct, 1]
    gate = jax.nn.sigmoid(gate)                          # EUP
    # Broadcast multiply over the spatial (lane) axis; widen in-register,
    # narrow back to the output dtype on store (keeps HBM bytes minimal).
    x = x_ref[...].astype(jnp.float32)          # [Ct, HW]
    o_ref[...] = (x * gate).astype(o_ref.dtype)


def _num_cout_tiles(c_out: int) -> int:
    """Always tile C_out (largest of 4/2/1 that keeps tiles a multiple of 8).

    4 tiles => on v7x the "parallel" axis shards 2 steps per TensorCore
    (dual HBM paths + intra-core pipelining); on single-TC v5e/v6e the
    auto double-buffer overlaps writeback of tile i with the fetch of
    tile i+1.  Capped at 4 to keep the ~0.35 us/step overhead small.
    """
    for n in (4, 2, 1):
        if c_out % n == 0 and (c_out // n) % 8 == 0:
            return n
    return 1


def conv1x1_sigmoid_mul(x470, x467, weight, bias):
    """x470: [1, C_in, 1, 1], x467: [1, C_out, H, W],
       weight: [C_out, C_in, 1, 1], bias: [C_out]."""
    n, c_in, _, _ = x470.shape
    _, c_out, h, w_sp = x467.shape
    hw = h * w_sp

    act_dtype = x467.dtype

    # Cast-free, transpose-free 2D views (NCHW with N=1 is contiguous in (C, HW)).
    s2 = x470.reshape(1, c_in)               # [1, C_in]  (row: c_in on the lane axis)
    w2 = weight.reshape(c_out, c_in)         # [C_out, C_in]
    b2 = bias.reshape(c_out, 1)              # [C_out, 1]
    x2 = x467.reshape(c_out, hw)             # [C_out, HW]

    # Narrow parameters to the activation dtype when that shrinks them
    # (e.g. bf16 activations): the kernel widens to f32 internally, so this
    # only reduces HBM bytes.  Never widen (would add traffic for nothing).
    if jnp.dtype(act_dtype).itemsize < jnp.dtype(w2.dtype).itemsize:
        w2 = w2.astype(act_dtype)
        b2 = b2.astype(act_dtype)

    n_tiles = _num_cout_tiles(c_out)
    tc = c_out // n_tiles

    x_isz = jnp.dtype(act_dtype).itemsize
    w_isz = jnp.dtype(w2.dtype).itemsize
    s_isz = jnp.dtype(s2.dtype).itemsize
    cost = pl.CostEstimate(
        flops=2 * c_out * c_in + 2 * c_out * hw,            # matvec + gated mul
        transcendentals=c_out,                              # sigmoid per channel
        bytes_accessed=(c_out * c_in + c_out) * w_isz       # weight + bias
                       + c_in * s_isz                       # squeeze vector
                       + 2 * c_out * hw * x_isz,            # x in + o out
    )

    out2 = pl.pallas_call(
        se_gate_kernel,
        out_shape=jax.ShapeDtypeStruct((c_out, hw), act_dtype),
        grid=(n_tiles,),
        in_specs=[
            pl.BlockSpec((tc, c_in), lambda i: (i, 0)),     # weight tile
            pl.BlockSpec((tc, 1),    lambda i: (i, 0)),     # bias tile
            pl.BlockSpec((1, c_in),  lambda i: (0, 0)),     # squeeze vec (replicated)
            pl.BlockSpec((tc, hw),   lambda i: (i, 0)),     # feature map tile
        ],
        out_specs=pl.BlockSpec((tc, hw), lambda i: (i, 0)),
        compiler_params=pltpu.CompilerParams(
            dimension_semantics=("parallel",)),
        cost_estimate=cost,
    )(w2, b2, s2, x2)

    return out2.reshape(n, c_out, h, w_sp)


if __name__ == "__main__":
    key = jax.random.PRNGKey(0)
    k1, k2, k3, k4 = jax.random.split(key, 4)

    C_IN, C_OUT, H, W = 56, 1344, 14, 14

    # Deterministic parameter init (shapes match Conv2d(56, 1344, 1)).
    fan_in = C_IN  # 1x1 kernel
    bound = 1.0 / (fan_in ** 0.5)
    weight = jax.random.uniform(k1, (C_OUT, C_IN, 1, 1),
                                minval=-bound, maxval=bound, dtype=jnp.float32)
    bias = jax.random.uniform(k2, (C_OUT,),
                              minval=-bound, maxval=bound, dtype=jnp.float32)

    # Inputs (same shapes/dtypes as the PyTorch module's forward).
    x470 = jax.random.normal(k3, (1, C_IN, 1, 1), dtype=jnp.float32)
    x467 = jax.random.normal(k4, (1, C_OUT, H, W), dtype=jnp.float32)

    out = conv1x1_sigmoid_mul(x470, x467, weight, bias)
    out = jax.block_until_ready(out)

    # Reference check in plain JAX.
    gate_ref = jax.nn.sigmoid(
        weight.reshape(C_OUT, C_IN) @ x470.reshape(C_IN, 1) + bias.reshape(C_OUT, 1)
    ).reshape(1, C_OUT, 1, 1)
    ref = gate_ref * x467
    assert out.shape == (1, C_OUT, H, W)
    assert out.dtype == x467.dtype
    assert jnp.allclose(out, ref, atol=1e-5, rtol=1e-5)

    # Also exercise the bf16-activation path the perf review asks for
    # (halves the dominant HBM stream; weight narrowed at the boundary).
    x467_bf16 = x467.astype(jnp.bfloat16)
    out_bf16 = jax.block_until_ready(
        conv1x1_sigmoid_mul(x470, x467_bf16, weight, bias))
    assert out_bf16.dtype == jnp.bfloat16
    assert jnp.allclose(out_bf16.astype(jnp.float32),
                        (gate_ref * x467_bf16.astype(jnp.float32)),
                        atol=2e-2, rtol=2e-2)

    print("KERNEL_OK")
</pallas_src>

<mosaic_0001>
module attributes {stable_mosaic.version = 11 : i64} {
  func.func @se_gate_kernel(%arg0: i32, %arg1: memref<336x56xf32, #tpu.memory_space<vmem>>, %arg2: memref<336x1xf32, #tpu.memory_space<vmem>>, %arg3: memref<1x56xf32, #tpu.memory_space<vmem>>, %arg4: memref<336x196xf32, #tpu.memory_space<vmem>>, %arg5: memref<336x196xf32, #tpu.memory_space<vmem>>) attributes {dimension_semantics = [#tpu.dimension_semantics<parallel>], iteration_bounds = array<i64: 4>, scalar_prefetch = 0 : i64, scratch_operands = 0 : i64, tpu.core_type = #tpu.core_type<tc>, window_params = [{transform_indices = @transform_0, window_bounds = array<i64: 336, 56>}, {transform_indices = @transform_1, window_bounds = array<i64: 336, 1>}, {pipeline_mode = #tpu.pipeline_mode<synchronous>, transform_indices = @transform_2, window_bounds = array<i64: 1, 56>}, {transform_indices = @transform_3, window_bounds = array<i64: 336, 196>}, {transform_indices = @transform_4, window_bounds = array<i64: 336, 196>}]} {
    %c0 = arith.constant 0 : index
    %c0_0 = arith.constant 0 : index
    %0 = vector.load %arg1[%c0, %c0_0] : memref<336x56xf32, #tpu.memory_space<vmem>>, vector<336x56xf32>
    %c0_1 = arith.constant 0 : index
    %c0_2 = arith.constant 0 : index
    %1 = vector.load %arg3[%c0_1, %c0_2] : memref<1x56xf32, #tpu.memory_space<vmem>>, vector<1x56xf32>
    %c0_3 = arith.constant 0 : index
    %c0_4 = arith.constant 0 : index
    %2 = vector.load %arg2[%c0_3, %c0_4] : memref<336x1xf32, #tpu.memory_space<vmem>>, vector<336x1xf32>
    %3 = vector.broadcast %1 : vector<1x56xf32> to vector<336x56xf32>
    %4 = arith.mulf %0, %3 : vector<336x56xf32>
    %cst = arith.constant dense<0.000000e+00> : vector<336xf32>
    %5 = vector.multi_reduction <add>, %4, %cst [1] : vector<336x56xf32> to vector<336xf32>
    %6 = vector.shape_cast %5 : vector<336xf32> to vector<336x1xf32>
    %7 = arith.addf %6, %2 : vector<336x1xf32>
    %8 = arith.negf %7 : vector<336x1xf32>
    %9 = math.exp %8 : vector<336x1xf32>
    %cst_5 = arith.constant 1.000000e+00 : f32
    %10 = vector.broadcast %cst_5 : f32 to vector<336x1xf32>
    %11 = arith.addf %10, %9 : vector<336x1xf32>
    %12 = arith.divf %10, %11 : vector<336x1xf32>
    %c0_6 = arith.constant 0 : index
    %c0_7 = arith.constant 0 : index
    %13 = vector.load %arg4[%c0_6, %c0_7] : memref<336x196xf32, #tpu.memory_space<vmem>>, vector<336x196xf32>
    %14 = vector.broadcast %12 : vector<336x1xf32> to vector<336x196xf32>
    %15 = arith.mulf %13, %14 : vector<336x196xf32>
    %c0_8 = arith.constant 0 : index
    %c0_9 = arith.constant 0 : index
    %16 = vector.load %arg5[%c0_8, %c0_9] : memref<336x196xf32, #tpu.memory_space<vmem>>, vector<336x196xf32>
    tpu.vector_store %arg5[%c0_8, %c0_9], %15 {strides = array<i32>} : memref<336x196xf32, #tpu.memory_space<vmem>>, vector<336x196xf32>,
    return
  }
  func.func @transform_0(%arg0: i32) -> (i32, i32) {
    %c0_i32 = arith.constant 0 : i32
    %c0_i32_0 = arith.constant 0 : i32
    return %arg0, %c0_i32 : i32, i32
  }
  func.func @transform_1(%arg0: i32) -> (i32, i32) {
    %c0_i32 = arith.constant 0 : i32
    %c0_i32_0 = arith.constant 0 : i32
    return %arg0, %c0_i32 : i32, i32
  }
  func.func @transform_2(%arg0: i32) -> (i32, i32) {
    %c0_i32 = arith.constant 0 : i32
    %c0_i32_0 = arith.constant 0 : i32
    %c0_i32_1 = arith.constant 0 : i32
    return %c0_i32, %c0_i32_0 : i32, i32
  }
  func.func @transform_3(%arg0: i32) -> (i32, i32) {
    %c0_i32 = arith.constant 0 : i32
    %c0_i32_0 = arith.constant 0 : i32
    return %arg0, %c0_i32 : i32, i32
  }
  func.func @transform_4(%arg0: i32) -> (i32, i32) {
    %c0_i32 = arith.constant 0 : i32
    %c0_i32_0 = arith.constant 0 : i32
    return %arg0, %c0_i32 : i32, i32
  }
}

</mosaic_0001>

<llo_original>
// kernel: tpu_custom_call.1
$region0: #{tpu_custom_call.1}
  #allocation0 [shape = 'u32[]', space=smem, size = 0x4, offset = 0x4, fixed_abs, tag = 'smem constant byte address 0x4 - core index']
  #allocation1 [shape = 'u32[144,128]{1,0:T(1,128)}', space=vmem, size = 0x12000, scoped, tag = 'internal scratch']
  %s0 = inlined_call_operand.vmem [shape: f32[1344,56], index: 0, kind: input, shape index: {}]
  %s1 = inlined_call_operand.vmem [shape: f32[1344,1], index: 1, kind: input, shape index: {}]
  %s2 = inlined_call_operand.vmem [shape: f32[1,56], index: 2, kind: input, shape index: {}]
  %s3 = inlined_call_operand.vmem [shape: f32[1344,196], index: 3, kind: input, shape index: {}]
  %s4 = inlined_call_operand.vmem [shape: f32[1344,196], index: 4, kind: output, shape index: {}]
  %s5 = sld [smem:[#allocation0]]
  $region49: #{tpu_custom_call.1} parent=0
    _
  %s7 = ssub.s32 1, %s5
  %s8 = scalar_select 0, %s7, %s5
  loop: start=0, step=1, limit=6
  $region2: #{tpu_custom_call.1} parent=0 // loop_pre_header
    _
  $region3: #{tpu_custom_call.1} parent=0 // loop_header
    %s10 = sphi 0, %s14
    %p11 = scmp.ge.s32.totalorder %s10, 6
    %s20 = sphi 0, %s22
    %s23 = sphi 0, %s20
    %s24 = sphi 0, %s23
    %s40 = sphi 0, %s24
    %s46 = sphi 0, %s48
    %s49 = sphi 0, %s46
    %s50 = sphi 0, %s49
    %s66 = sphi 0, %s50
    %s70 = sphi 0, %s70
    %s72 = sphi 0, %s70
    %s73 = sphi 0, %s72
    %s87 = sphi 0, %s73
    %s93 = sphi 0, %s95
    %s96 = sphi 0, %s93
    %s97 = sphi 0, %s96
    %s113 = sphi 0, %s97
    %s119 = sphi 0, %s121
    %s122 = sphi 0, %s119
    %s123 = sphi 0, %s122
    %s139 = sphi 0, %s123
  $region4: #{tpu_custom_call.1} parent=0 // loop_header_branch
    %13 = sbr.rel (%p11) target = $region8
  $region5: #{tpu_custom_call.1} parent=0 // loop_body
    %s15 = ssub.s32 %s10, 1
    %s16 = ssub.s32 %s10, 2
    %s17 = sadd.s32 %s10, 1
    %s18 = ssub.s32 %s10, %s17
    %p19 = scmp.eq.s32.totalorder %s18, 0
    %s21 = sadd.s32 %s20, 1
    %s22 = scalar_select %p19, %s20, %s21
    %p25 = pneg %p19
    %p26 = scmp.eq.s32.totalorder %s10, 3
    %p27 = por %p25, %p26
    %p28 = scmp.ne.s32.totalorder %s20, %s23
    %p29 = scmp.eq.s32.totalorder %s10, 0
    %p30 = por %p28, %p29
    %p31 = scmp.ne.s32.totalorder %s20, %s23
    %p32 = scmp.eq.s32.totalorder %s15, 3
    %p33 = por %p31, %p32
    %p34 = scmp.ne.s32.totalorder %s23, %s24
    %p35 = scmp.eq.s32.totalorder %s15, 0
    %p36 = por %p34, %p35
    %p37 = scmp.ne.s32.totalorder %s23, %s24
    %p38 = scmp.eq.s32.totalorder %s16, 3
    %p39 = por %p37, %p38
    %p41 = scmp.ne.s32.totalorder %s24, %s40
    %p42 = scmp.eq.s32.totalorder %s16, 0
    %p43 = por %p41, %p42
    %s44 = ssub.s32 %s10, %s17
    %p45 = scmp.eq.s32.totalorder %s44, 0
    %s47 = sadd.s32 %s46, 1
    %s48 = scalar_select %p45, %s46, %s47
    %p51 = pneg %p45
    %p52 = scmp.eq.s32.totalorder %s10, 3
    %p53 = por %p51, %p52
    %p54 = scmp.ne.s32.totalorder %s46, %s49
    %p55 = scmp.eq.s32.totalorder %s10, 0
    %p56 = por %p54, %p55
    %p57 = scmp.ne.s32.totalorder %s46, %s49
    %p58 = scmp.eq.s32.totalorder %s15, 3
    %p59 = por %p57, %p58
    %p60 = scmp.ne.s32.totalorder %s49, %s50
    %p61 = scmp.eq.s32.totalorder %s15, 0
    %p62 = por %p60, %p61
    %p63 = scmp.ne.s32.totalorder %s49, %s50
    %p64 = scmp.eq.s32.totalorder %s16, 3
    %p65 = por %p63, %p64
    %p67 = scmp.ne.s32.totalorder %s50, %s66
    %p68 = scmp.eq.s32.totalorder %s16, 0
    %p69 = por %p67, %p68
    %s71 = sadd.s32 %s70, 1
    %p74 = scmp.eq.s32.totalorder %s10, 3
    %p75 = scmp.ne.s32.totalorder %s70, %s72
    %p76 = scmp.eq.s32.totalorder %s10, 0
    %p77 = por %p75, %p76
    %p78 = scmp.ne.s32.totalorder %s70, %s72
    %p79 = scmp.eq.s32.totalorder %s15, 3
    %p80 = por %p78, %p79
    %p81 = scmp.ne.s32.totalorder %s72, %s73
    %p82 = scmp.eq.s32.totalorder %s15, 0
    %p83 = por %p81, %p82
    %p84 = scmp.ne.s32.totalorder %s72, %s73
    %p85 = scmp.eq.s32.totalorder %s16, 3
    %p86 = por %p84, %p85
    %p88 = scmp.ne.s32.totalorder %s73, %s87
    %p89 = scmp.eq.s32.totalorder %s16, 0
    %p90 = por %p88, %p89
    %s91 = ssub.s32 %s10, %s17
    %p92 = scmp.eq.s32.totalorder %s91, 0
    %s94 = sadd.s32 %s93, 1
    %s95 = scalar_select %p92, %s93, %s94
    %p98 = pneg %p92
    %p99 = scmp.eq.s32.totalorder %s10, 3
    %p100 = por %p98, %p99
    %p101 = scmp.ne.s32.totalorder %s93, %s96
    %p102 = scmp.eq.s32.totalorder %s10, 0
    %p103 = por %p101, %p102
    %p104 = scmp.ne.s32.totalorder %s93, %s96
    %p105 = scmp.eq.s32.totalorder %s15, 3
    %p106 = por %p104, %p105
    %p107 = scmp.ne.s32.totalorder %s96, %s97
    %p108 = scmp.eq.s32.totalorder %s15, 0
    %p109 = por %p107, %p108
    %p110 = scmp.ne.s32.totalorder %s96, %s97
    %p111 = scmp.eq.s32.totalorder %s16, 3
    %p112 = por %p110, %p111
    %p114 = scmp.ne.s32.totalorder %s97, %s113
    %p115 = scmp.eq.s32.totalorder %s16, 0
    %p116 = por %p114, %p115
    %s117 = ssub.s32 %s10, %s17
    %p118 = scmp.eq.s32.totalorder %s117, 0
    %s120 = sadd.s32 %s119, 1
    %s121 = scalar_select %p118, %s119, %s120
    %p124 = pneg %p118
    %p125 = scmp.eq.s32.totalorder %s10, 3
    %p126 = por %p124, %p125
    %p127 = scmp.ne.s32.totalorder %s119, %s122
    %p128 = scmp.eq.s32.totalorder %s10, 0
    %p129 = por %p127, %p128
    %p130 = scmp.ne.s32.totalorder %s119, %s122
    %p131 = scmp.eq.s32.totalorder %s15, 3
    %p132 = por %p130, %p131
    %p133 = scmp.ne.s32.totalorder %s122, %s123
    %p134 = scmp.eq.s32.totalorder %s15, 0
    %p135 = por %p133, %p134
    %p136 = scmp.ne.s32.totalorder %s122, %s123
    %p137 = scmp.eq.s32.totalorder %s16, 3
    %p138 = por %p136, %p137
    %p140 = scmp.ne.s32.totalorder %s123, %s139
    %p141 = scmp.eq.s32.totalorder %s16, 0
    %p142 = por %p140, %p141
    %p143 = scmp.le.s32.totalorder 1, %s10
    %p144 = scmp.lt.s32.totalorder %s10, 5
    %p145 = pnand %p143, %p144
    %p146 = pneg %p145
    // Predicated region
    $region9: #{tpu_custom_call.1} parent=5 // pred_check
      _
    $region10: #{tpu_custom_call.1} parent=5 // pred_check_branch
      %148 = sbr.rel (%p145) target = $region12
    $region11: #{tpu_custom_call.1} parent=5 // pred_region
      %s149 = ssub.s32 %s10, 1
      // Predicated region
      $region13: #{tpu_custom_call.1} parent=11 // pred_check
        %p150 = pneg %p83
      $region14: #{tpu_custom_call.1} parent=11 // pred_check_branch
        %152 = sbr.rel (%p150) target = $region16
      $region15: #{tpu_custom_call.1} parent=11 // pred_region
        _
      $region16: #{tpu_custom_call.1} parent=11 // pred_fallthru
        _
    $region12: #{tpu_custom_call.1} parent=5 // pred_fallthru
      _
    %p153 = scmp.lt.s32.totalorder %s10, 4
    // Predicated region
    $region17: #{tpu_custom_call.1} parent=5 // pred_check
      %p154 = pneg %p153
    $region18: #{tpu_custom_call.1} parent=5 // pred_check_branch
      %156 = sbr.rel (%p154) target = $region20
    $region19: #{tpu_custom_call.1} parent=5 // pred_region
      // Predicated region
      $region21: #{tpu_custom_call.1} parent=19 // pred_check
        %p157 = pneg %p30
      $region22: #{tpu_custom_call.1} parent=19 // pred_check_branch
        %159 = sbr.rel (%p157) target = $region24
      $region23: #{tpu_custom_call.1} parent=19 // pred_region
        %s160 = smul.u32 42, %s10
        %p161 = scmp.lt.s32.totalorder %s160, 167
        %s162 = scalar_select %p161, %s160, 167
        %s163 = smul.addr %s162, 8
        %s164 = scalar_lea.vmem %s0, %s163
        %s165 = smul.u32 42, %s10
      $region24: #{tpu_custom_call.1} parent=19 // pred_fallthru
        _
      // Predicated region
      $region25: #{tpu_custom_call.1} parent=19 // pred_check
        %p166 = pneg %p56
      $region26: #{tpu_custom_call.1} parent=19 // pred_check_branch
        %168 = sbr.rel (%p166) target = $region28
      $region27: #{tpu_custom_call.1} parent=19 // pred_region
        %s169 = smul.u32 42, %s10
        %p170 = scmp.lt.s32.totalorder %s169, 167
        %s171 = scalar_select %p170, %s169, 167
        %s172 = smul.addr %s171, 8
        %s173 = scalar_lea.vmem %s1, %s172
        %s174 = smul.u32 42, %s10
      $region28: #{tpu_custom_call.1} parent=19 // pred_fallthru
        _
      // Predicated region
      $region29: #{tpu_custom_call.1} parent=19 // pred_check
        %p175 = pneg %p103
      $region30: #{tpu_custom_call.1} parent=19 // pred_check_branch
        %177 = sbr.rel (%p175) target = $region32
      $region31: #{tpu_custom_call.1} parent=19 // pred_region
        %s178 = smul.u32 42, %s10
        %p179 = scmp.lt.s32.totalorder %s178, 167
        %s180 = scalar_select %p179, %s178, 167
        %s181 = smul.addr %s180, 2
        %s182 = smul.addr %s181, 8
        %s183 = scalar_lea.vmem %s3, %s182
        %s184 = smul.u32 42, %s10
      $region32: #{tpu_custom_call.1} parent=19 // pred_fallthru
        _
    $region20: #{tpu_custom_call.1} parent=5 // pred_fallthru
      _
    %p185 = scmp.le.s32.totalorder 1, %s10
    %p186 = scmp.lt.s32.totalorder %s10, 5
    %p187 = pnand %p185, %p186
    %p188 = pneg %p187
    // Predicated region
    $region33: #{tpu_custom_call.1} parent=5 // pred_check
      _
    $region34: #{tpu_custom_call.1} parent=5 // pred_check_branch
      %190 = sbr.rel (%p187) target = $region36
    $region35: #{tpu_custom_call.1} parent=5 // pred_region
      %s191 = ssub.s32 %s10, 1
      %s192 = smul.u32 42, %s15
      %p193 = scmp.lt.s32.totalorder %s192, 167
      %s194 = scalar_select %p193, %s192, 167
      %s195 = smul.addr %s194, 8
      %s196 = scalar_lea.vmem %s0, %s195
      %p197 = pneg %p36
      %p198 = pneg %p33
      %s199 = smul.u32 42, %s15
      %p200 = scmp.lt.s32.totalorder %s199, 167
      %s201 = scalar_select %p200, %s199, 167
      %s202 = smul.addr %s201, 8
      %s203 = scalar_lea.vmem %s1, %s202
      %p204 = pneg %p62
      %p205 = pneg %p59
      %p206 = pneg %p83
      %p207 = pneg %p80
      %s208 = smul.u32 42, %s15
      %p209 = scmp.lt.s32.totalorder %s208, 167
      %s210 = scalar_select %p209, %s208, 167
      %s211 = smul.addr %s210, 2
      %s212 = smul.addr %s211, 8
      %s213 = scalar_lea.vmem %s3, %s212
      %p214 = pneg %p109
      %p215 = pneg %p106
      %p216 = pneg %p135
      %p217 = pneg %p132
      %s218 = smul.u32 42, %s15
      %p219 = scmp.lt.s32.totalorder %s218, 167
      %s220 = scalar_select %p219, %s218, 167
      %s221 = smul.addr %s220, 2
      %s222 = smul.addr %s221, 8
      %s223 = scalar_lea.vmem %s4, %s222
      %s224 = smul.u32 42, %s15
      %p225 = scmp.lt.s32.totalorder %s224, 167
      %s226 = scalar_select %p225, %s224, 167
      %s227 = smul.addr %s226, 8
      %s228 = scalar_lea.vmem %s0, %s227
      %s229 = smul.u32 42, %s15
      %s230 = smul.u32 42, %s15
      %p231 = scmp.lt.s32.totalorder %s230, 167
      %s232 = scalar_select %p231, %s230, 167
      %s233 = smul.addr %s232, 8
      %s234 = scalar_lea.vmem %s1, %s233
      %s235 = smul.u32 42, %s15
      %s236 = smul.u32 42, %s15
      %p237 = scmp.lt.s32.totalorder %s236, 167
      %s238 = scalar_select %p237, %s236, 167
      %s239 = smul.addr %s238, 2
      %s240 = smul.addr %s239, 8
      %s241 = scalar_lea.vmem %s3, %s240
      %s242 = smul.u32 42, %s15
      %s243 = smul.u32 42, %s15
      %p244 = scmp.lt.s32.totalorder %s243, 167
      %s245 = scalar_select %p244, %s243, 167
      %s246 = smul.addr %s245, 2
      %s247 = smul.addr %s246, 8
      %s248 = scalar_lea.vmem %s4, %s247
      %s249 = smul.u32 42, %s15
      %v250 = vld [vmem:[%s228] sm:$0xff]
      %v251 = vld [vmem:[%s228 + $0x8] sm:$0xff]
      %v252 = vld [vmem:[%s228 + $0x10] sm:$0xff]
      %v253 = vld [vmem:[%s228 + $0x18] sm:$0xff]
      %v254 = vld [vmem:[%s228 + $0x20] sm:$0xff]
      %v255 = vld [vmem:[%s228 + $0x28] sm:$0xff]
      %v256 = vld [vmem:[%s228 + $0x30] sm:$0xff]
      %v257 = vld [vmem:[%s228 + $0x38] sm:$0xff]
      %v258 = vld [vmem:[%s228 + $0x40] sm:$0xff]
      %v259 = vld [vmem:[%s228 + $0x48] sm:$0xff]
      %v260 = vld [vmem:[%s228 + $0x50] sm:$0xff]
      %v261 = vld [vmem:[%s228 + $0x58] sm:$0xff]
      %v262 = vld [vmem:[%s228 + $0x60] sm:$0xff]
      %v263 = vld [vmem:[%s228 + $0x68] sm:$0xff]
      %v264 = vld [vmem:[%s228 + $0x70] sm:$0xff]
      %v265 = vld [vmem:[%s228 + $0x78] sm:$0xff]
      %v266 = vld [vmem:[%s228 + $0x80] sm:$0xff]
      %v267 = vld [vmem:[%s228 + $0x88] sm:$0xff]
      %v268 = vld [vmem:[%s228 + $0x90] sm:$0xff]
      %v269 = vld [vmem:[%s228 + $0x98] sm:$0xff]
      %v270 = vld [vmem:[%s228 + $0xa0] sm:$0xff]
      %v271 = vld [vmem:[%s228 + $0xa8] sm:$0xff]
      %v272 = vld [vmem:[%s228 + $0xb0] sm:$0xff]
      %v273 = vld [vmem:[%s228 + $0xb8] sm:$0xff]
      %v274 = vld [vmem:[%s228 + $0xc0] sm:$0xff]
      %v275 = vld [vmem:[%s228 + $0xc8] sm:$0xff]
      %v276 = vld [vmem:[%s228 + $0xd0] sm:$0xff]
      %v277 = vld [vmem:[%s228 + $0xd8] sm:$0xff]
      %v278 = vld [vmem:[%s228 + $0xe0] sm:$0xff]
      %v279 = vld [vmem:[%s228 + $0xe8] sm:$0xff]
      %v280 = vld [vmem:[%s228 + $0xf0] sm:$0xff]
      %v281 = vld [vmem:[%s228 + $0xf8] sm:$0xff]
      %v282 = vld [vmem:[%s228 + $0x100] sm:$0xff]
      %v283 = vld [vmem:[%s228 + $0x108] sm:$0xff]
      %v284 = vld [vmem:[%s228 + $0x110] sm:$0xff]
      %v285 = vld [vmem:[%s228 + $0x118] sm:$0xff]
      %v286 = vld [vmem:[%s228 + $0x120] sm:$0xff]
      %v287 = vld [vmem:[%s228 + $0x128] sm:$0xff]
      %v288 = vld [vmem:[%s228 + $0x130] sm:$0xff]
      %v289 = vld [vmem:[%s228 + $0x138] sm:$0xff]
      %v290 = vld [vmem:[%s228 + $0x140] sm:$0xff]
      %v291 = vld [vmem:[%s228 + $0x148] sm:$0xff]
      %v292 = vld [vmem:[%s2] sm:$0x1]
      %v293 = vld [vmem:[%s234] sm:$0xff]
      %v294 = vld [vmem:[%s234 + $0x8] sm:$0xff]
      %v295 = vld [vmem:[%s234 + $0x10] sm:$0xff]
      %v296 = vld [vmem:[%s234 + $0x18] sm:$0xff]
      %v297 = vld [vmem:[%s234 + $0x20] sm:$0xff]
      %v298 = vld [vmem:[%s234 + $0x28] sm:$0xff]
      %v299 = vld [vmem:[%s234 + $0x30] sm:$0xff]
      %v300 = vld [vmem:[%s234 + $0x38] sm:$0xff]
      %v301 = vld [vmem:[%s234 + $0x40] sm:$0xff]
      %v302 = vld [vmem:[%s234 + $0x48] sm:$0xff]
      %v303 = vld [vmem:[%s234 + $0x50] sm:$0xff]
      %v304 = vld [vmem:[%s234 + $0x58] sm:$0xff]
      %v305 = vld [vmem:[%s234 + $0x60] sm:$0xff]
      %v306 = vld [vmem:[%s234 + $0x68] sm:$0xff]
      %v307 = vld [vmem:[%s234 + $0x70] sm:$0xff]
      %v308 = vld [vmem:[%s234 + $0x78] sm:$0xff]
      %v309 = vld [vmem:[%s234 + $0x80] sm:$0xff]
      %v310 = vld [vmem:[%s234 + $0x88] sm:$0xff]
      %v311 = vld [vmem:[%s234 + $0x90] sm:$0xff]
      %v312 = vld [vmem:[%s234 + $0x98] sm:$0xff]
      %v313 = vld [vmem:[%s234 + $0xa0] sm:$0xff]
      %v314 = vld [vmem:[%s234 + $0xa8] sm:$0xff]
      %v315 = vld [vmem:[%s234 + $0xb0] sm:$0xff]
      %v316 = vld [vmem:[%s234 + $0xb8] sm:$0xff]
      %v317 = vld [vmem:[%s234 + $0xc0] sm:$0xff]
      %v318 = vld [vmem:[%s234 + $0xc8] sm:$0xff]
      %v319 = vld [vmem:[%s234 + $0xd0] sm:$0xff]
      %v320 = vld [vmem:[%s234 + $0xd8] sm:$0xff]
      %v321 = vld [vmem:[%s234 + $0xe0] sm:$0xff]
      %v322 = vld [vmem:[%s234 + $0xe8] sm:$0xff]
      %v323 = vld [vmem:[%s234 + $0xf0] sm:$0xff]
      %v324 = vld [vmem:[%s234 + $0xf8] sm:$0xff]
      %v325 = vld [vmem:[%s234 + $0x100] sm:$0xff]
      %v326 = vld [vmem:[%s234 + $0x108] sm:$0xff]
      %v327 = vld [vmem:[%s234 + $0x110] sm:$0xff]
      %v328 = vld [vmem:[%s234 + $0x118] sm:$0xff]
      %v329 = vld [vmem:[%s234 + $0x120] sm:$0xff]
      %v330 = vld [vmem:[%s234 + $0x128] sm:$0xff]
      %v331 = vld [vmem:[%s234 + $0x130] sm:$0xff]
      %v332 = vld [vmem:[%s234 + $0x138] sm:$0xff]
      %v333 = vld [vmem:[%s234 + $0x140] sm:$0xff]
      %v334 = vld [vmem:[%s234 + $0x148] sm:$0xff]
      %v336 = vlaneseq
      %v337 = vshrl.u32 %v336, 7
      %v338 = vsub.s32 0, %v337
      %v339 = vrot.slane %v292, %v338
      %v341 = vmul.f32 %v250, %v339
      %v342 = vmul.f32 %v251, %v339
      %v343 = vmul.f32 %v252, %v339
      %v344 = vmul.f32 %v253, %v339
      %v345 = vmul.f32 %v254, %v339
      %v346 = vmul.f32 %v255, %v339
      %v347 = vmul.f32 %v256, %v339
      %v348 = vmul.f32 %v257, %v339
      %v349 = vmul.f32 %v258, %v339
      %v350 = vmul.f32 %v259, %v339
      %v351 = vmul.f32 %v260, %v339
      %v352 = vmul.f32 %v261, %v339
      %v353 = vmul.f32 %v262, %v339
      %v354 = vmul.f32 %v263, %v339
      %v355 = vmul.f32 %v264, %v339
      %v356 = vmul.f32 %v265, %v339
      %v357 = vmul.f32 %v266, %v339
      %v358 = vmul.f32 %v267, %v339
      %v359 = vmul.f32 %v268, %v339
      %v360 = vmul.f32 %v269, %v339
      %v361 = vmul.f32 %v270, %v339
      %v362 = vmul.f32 %v271, %v339
      %v363 = vmul.f32 %v272, %v339
      %v364 = vmul.f32 %v273, %v339
      %v365 = vmul.f32 %v274, %v339
      %v366 = vmul.f32 %v275, %v339
      %v367 = vmul.f32 %v276, %v339
      %v368 = vmul.f32 %v277, %v339
      %v369 = vmul.f32 %v278, %v339
      %v370 = vmul.f32 %v279, %v339
      %v371 = vmul.f32 %v280, %v339
      %v372 = vmul.f32 %v281, %v339
      %v373 = vmul.f32 %v282, %v339
      %v374 = vmul.f32 %v283, %v339
      %v375 = vmul.f32 %v284, %v339
      %v376 = vmul.f32 %v285, %v339
      %v377 = vmul.f32 %v286, %v339
      %v378 = vmul.f32 %v287, %v339
      %v379 = vmul.f32 %v288, %v339
      %v380 = vmul.f32 %v289, %v339
      %v381 = vmul.f32 %v290, %v339
      %v382 = vmul.f32 %v291, %v339
      %vm383 = vcmask 457728
      %v384 = vsel %vm383, %v341, 0.0
      %385 = vadd.xlane.f32.xlu0 %v384
      %v386 = vpop.xlane.xlu0 %385
      %v387 = vsel %vm383, %v342, 0.0
      %388 = vadd.xlane.f32.xlu0 %v387
      %v389 = vpop.xlane.xlu0 %388
      %v390 = vsel %vm383, %v343, 0.0
      %391 = vadd.xlane.f32.xlu0 %v390
      %v392 = vpop.xlane.xlu0 %391
      %v393 = vsel %vm383, %v344, 0.0
      %394 = vadd.xlane.f32.xlu0 %v393
      %v395 = vpop.xlane.xlu0 %394
      %v396 = vsel %vm383, %v345, 0.0
      %397 = vadd.xlane.f32.xlu0 %v396
      %v398 = vpop.xlane.xlu0 %397
      %v399 = vsel %vm383, %v346, 0.0
      %400 = vadd.xlane.f32.xlu0 %v399
      %v401 = vpop.xlane.xlu0 %400
      %v402 = vsel %vm383, %v347, 0.0
      %403 = vadd.xlane.f32.xlu0 %v402
      %v404 = vpop.xlane.xlu0 %403
      %v405 = vsel %vm383, %v348, 0.0
      %406 = vadd.xlane.f32.xlu0 %v405
      %v407 = vpop.xlane.xlu0 %406
      %v408 = vsel %vm383, %v349, 0.0
      %409 = vadd.xlane.f32.xlu0 %v408
      %v410 = vpop.xlane.xlu0 %409
      %v411 = vsel %vm383, %v350, 0.0
      %412 = vadd.xlane.f32.xlu0 %v411
      %v413 = vpop.xlane.xlu0 %412
      %v414 = vsel %vm383, %v351, 0.0
      %415 = vadd.xlane.f32.xlu0 %v414
      %v416 = vpop.xlane.xlu0 %415
      %v417 = vsel %vm383, %v352, 0.0
      %418 = vadd.xlane.f32.xlu0 %v417
      %v419 = vpop.xlane.xlu0 %418
      %v420 = vsel %vm383, %v353, 0.0
      %421 = vadd.xlane.f32.xlu0 %v420
      %v422 = vpop.xlane.xlu0 %421
      %v423 = vsel %vm383, %v354, 0.0
      %424 = vadd.xlane.f32.xlu0 %v423
      %v425 = vpop.xlane.xlu0 %424
      %v426 = vsel %vm383, %v355, 0.0
      %427 = vadd.xlane.f32.xlu0 %v426
      %v428 = vpop.xlane.xlu0 %427
      %v429 = vsel %vm383, %v356, 0.0
      %430 = vadd.xlane.f32.xlu0 %v429
      %v431 = vpop.xlane.xlu0 %430
      %v432 = vsel %vm383, %v357, 0.0
      %433 = vadd.xlane.f32.xlu0 %v432
      %v434 = vpop.xlane.xlu0 %433
      %v435 = vsel %vm383, %v358, 0.0
      %436 = vadd.xlane.f32.xlu0 %v435
      %v437 = vpop.xlane.xlu0 %436
      %v438 = vsel %vm383, %v359, 0.0
      %439 = vadd.xlane.f32.xlu0 %v438
      %v440 = vpop.xlane.xlu0 %439
      %v441 = vsel %vm383, %v360, 0.0
      %442 = vadd.xlane.f32.xlu0 %v441
      %v443 = vpop.xlane.xlu0 %442
      %v444 = vsel %vm383, %v361, 0.0
      %445 = vadd.xlane.f32.xlu0 %v444
      %v446 = vpop.xlane.xlu0 %445
      %v447 = vsel %vm383, %v362, 0.0
      %448 = vadd.xlane.f32.xlu0 %v447
      %v449 = vpop.xlane.xlu0 %448
      %v450 = vsel %vm383, %v363, 0.0
      %451 = vadd.xlane.f32.xlu0 %v450
      %v452 = vpop.xlane.xlu0 %451
      %v453 = vsel %vm383, %v364, 0.0
      %454 = vadd.xlane.f32.xlu0 %v453
      %v455 = vpop.xlane.xlu0 %454
      %v456 = vsel %vm383, %v365, 0.0
      %457 = vadd.xlane.f32.xlu0 %v456
      %v458 = vpop.xlane.xlu0 %457
      %v459 = vsel %vm383, %v366, 0.0
      %460 = vadd.xlane.f32.xlu0 %v459
      %v461 = vpop.xlane.xlu0 %460
      %v462 = vsel %vm383, %v367, 0.0
      %463 = vadd.xlane.f32.xlu0 %v462
      %v464 = vpop.xlane.xlu0 %463
      %v465 = vsel %vm383, %v368, 0.0
      %466 = vadd.xlane.f32.xlu0 %v465
      %v467 = vpop.xlane.xlu0 %466
      %v468 = vsel %vm383, %v369, 0.0
      %469 = vadd.xlane.f32.xlu0 %v468
      %v470 = vpop.xlane.xlu0 %469
      %v471 = vsel %vm383, %v370, 0.0
      %472 = vadd.xlane.f32.xlu0 %v471
      %v473 = vpop.xlane.xlu0 %472
      %v474 = vsel %vm383, %v371, 0.0
      %475 = vadd.xlane.f32.xlu0 %v474
      %v476 = vpop.xlane.xlu0 %475
      %v477 = vsel %vm383, %v372, 0.0
      %478 = vadd.xlane.f32.xlu0 %v477
      %v479 = vpop.xlane.xlu0 %478
      %v480 = vsel %vm383, %v373, 0.0
      %481 = vadd.xlane.f32.xlu0 %v480
      %v482 = vpop.xlane.xlu0 %481
      %v483 = vsel %vm383, %v374, 0.0
      %484 = vadd.xlane.f32.xlu0 %v483
      %v485 = vpop.xlane.xlu0 %484
      %v486 = vsel %vm383, %v375, 0.0
      %487 = vadd.xlane.f32.xlu0 %v486
      %v488 = vpop.xlane.xlu0 %487
      %v489 = vsel %vm383, %v376, 0.0
      %490 = vadd.xlane.f32.xlu0 %v489
      %v491 = vpop.xlane.xlu0 %490
      %v492 = vsel %vm383, %v377, 0.0
      %493 = vadd.xlane.f32.xlu0 %v492
      %v494 = vpop.xlane.xlu0 %493
      %v495 = vsel %vm383, %v378, 0.0
      %496 = vadd.xlane.f32.xlu0 %v495
      %v497 = vpop.xlane.xlu0 %496
      %v498 = vsel %vm383, %v379, 0.0
      %499 = vadd.xlane.f32.xlu0 %v498
      %v500 = vpop.xlane.xlu0 %499
      %v501 = vsel %vm383, %v380, 0.0
      %502 = vadd.xlane.f32.xlu0 %v501
      %v503 = vpop.xlane.xlu0 %502
      %v504 = vsel %vm383, %v381, 0.0
      %505 = vadd.xlane.f32.xlu0 %v504
      %v506 = vpop.xlane.xlu0 %505
      %v507 = vsel %vm383, %v382, 0.0
      %508 = vadd.xlane.f32.xlu0 %v507
      %v509 = vpop.xlane.xlu0 %508
      %v510 = vadd.f32 %v386, %v293
      %v511 = vadd.f32 %v389, %v294
      %v512 = vadd.f32 %v392, %v295
      %v513 = vadd.f32 %v395, %v296
      %v514 = vadd.f32 %v398, %v297
      %v515 = vadd.f32 %v401, %v298
      %v516 = vadd.f32 %v404, %v299
      %v517 = vadd.f32 %v407, %v300
      %v518 = vadd.f32 %v410, %v301
      %v519 = vadd.f32 %v413, %v302
      %v520 = vadd.f32 %v416, %v303
      %v521 = vadd.f32 %v419, %v304
      %v522 = vadd.f32 %v422, %v305
      %v523 = vadd.f32 %v425, %v306
      %v524 = vadd.f32 %v428, %v307
      %v525 = vadd.f32 %v431, %v308
      %v526 = vadd.f32 %v434, %v309
      %v527 = vadd.f32 %v437, %v310
      %v528 = vadd.f32 %v440, %v311
      %v529 = vadd.f32 %v443, %v312
      %v530 = vadd.f32 %v446, %v313
      %v531 = vadd.f32 %v449, %v314
      %v532 = vadd.f32 %v452, %v315
      %v533 = vadd.f32 %v455, %v316
      %v534 = vadd.f32 %v458, %v317
      %v535 = vadd.f32 %v461, %v318
      %v536 = vadd.f32 %v464, %v319
      %v537 = vadd.f32 %v467, %v320
      %v538 = vadd.f32 %v470, %v321
      %v539 = vadd.f32 %v473, %v322
      %v540 = vadd.f32 %v476, %v323
      %v541 = vadd.f32 %v479, %v324
      %v542 = vadd.f32 %v482, %v325
      %v543 = vadd.f32 %v485, %v326
      %v544 = vadd.f32 %v488, %v327
      %v545 = vadd.f32 %v491, %v328
      %v546 = vadd.f32 %v494, %v329
      %v547 = vadd.f32 %v497, %v330
      %v548 = vadd.f32 %v500, %v331
      %v549 = vadd.f32 %v503, %v332
      %v550 = vadd.f32 %v506, %v333
      %v551 = vadd.f32 %v509, %v334
      %v552 = vxor.u32 %v510, 2147483648
      %v553 = vxor.u32 %v511, 2147483648
      %v554 = vxor.u32 %v512, 2147483648
      %v555 = vxor.u32 %v513, 2147483648
      %v556 = vxor.u32 %v514, 2147483648
      %v557 = vxor.u32 %v515, 2147483648
      %v558 = vxor.u32 %v516, 2147483648
      %v559 = vxor.u32 %v517, 2147483648
      %v560 = vxor.u32 %v518, 2147483648
      %v561 = vxor.u32 %v519, 2147483648
      %v562 = vxor.u32 %v520, 2147483648
      %v563 = vxor.u32 %v521, 2147483648
      %v564 = vxor.u32 %v522, 2147483648
      %v565 = vxor.u32 %v523, 2147483648
      %v566 = vxor.u32 %v524, 2147483648
      %v567 = vxor.u32 %v525, 2147483648
      %v568 = vxor.u32 %v526, 2147483648
      %v569 = vxor.u32 %v527, 2147483648
      %v570 = vxor.u32 %v528, 2147483648
      %v571 = vxor.u32 %v529, 2147483648
      %v572 = vxor.u32 %v530, 2147483648
      %v573 = vxor.u32 %v531, 2147483648
      %v574 = vxor.u32 %v532, 2147483648
      %v575 = vxor.u32 %v533, 2147483648
      %v576 = vxor.u32 %v534, 2147483648
      %v577 = vxor.u32 %v535, 2147483648
      %v578 = vxor.u32 %v536, 2147483648
      %v579 = vxor.u32 %v537, 2147483648
      %v580 = vxor.u32 %v538, 2147483648
      %v581 = vxor.u32 %v539, 2147483648
      %v582 = vxor.u32 %v540, 2147483648
      %v583 = vxor.u32 %v541, 2147483648
      %v584 = vxor.u32 %v542, 2147483648
      %v585 = vxor.u32 %v543, 2147483648
      %v586 = vxor.u32 %v544, 2147483648
      %v587 = vxor.u32 %v545, 2147483648
      %v588 = vxor.u32 %v546, 2147483648
      %v589 = vxor.u32 %v547, 2147483648
      %v590 = vxor.u32 %v548, 2147483648
      %v591 = vxor.u32 %v549, 2147483648
      %v592 = vxor.u32 %v550, 2147483648
      %v593 = vxor.u32 %v551, 2147483648
      %v594 = vmul.f32 %v552, 1.442695
      %v595 = vpow.pop %v594
      %v596 = vmul.f32 %v553, 1.442695
      %v597 = vpow.pop %v596
      %v598 = vmul.f32 %v554, 1.442695
      %v599 = vpow.pop %v598
      %v600 = vmul.f32 %v555, 1.442695
      %v601 = vpow.pop %v600
      %v602 = vmul.f32 %v556, 1.442695
      %v603 = vpow.pop %v602
      %v604 = vmul.f32 %v557, 1.442695
      %v605 = vpow.pop %v604
      %v606 = vmul.f32 %v558, 1.442695
      %v607 = vpow.pop %v606
      %v608 = vmul.f32 %v559, 1.442695
      %v609 = vpow.pop %v608
      %v610 = vmul.f32 %v560, 1.442695
      %v611 = vpow.pop %v610
      %v612 = vmul.f32 %v561, 1.442695
      %v613 = vpow.pop %v612
      %v614 = vmul.f32 %v562, 1.442695
      %v615 = vpow.pop %v614
      %v616 = vmul.f32 %v563, 1.442695
      %v617 = vpow.pop %v616
      %v618 = vmul.f32 %v564, 1.442695
      %v619 = vpow.pop %v618
      %v620 = vmul.f32 %v565, 1.442695
      %v621 = vpow.pop %v620
      %v622 = vmul.f32 %v566, 1.442695
      %v623 = vpow.pop %v622
      %v624 = vmul.f32 %v567, 1.442695
      %v625 = vpow.pop %v624
      %v626 = vmul.f32 %v568, 1.442695
      %v627 = vpow.pop %v626
      %v628 = vmul.f32 %v569, 1.442695
      %v629 = vpow.pop %v628
      %v630 = vmul.f32 %v570, 1.442695
      %v631 = vpow.pop %v630
      %v632 = vmul.f32 %v571, 1.442695
      %v633 = vpow.pop %v632
      %v634 = vmul.f32 %v572, 1.442695
      %v635 = vpow.pop %v634
      %v636 = vmul.f32 %v573, 1.442695
      %v637 = vpow.pop %v636
      %v638 = vmul.f32 %v574, 1.442695
      %v639 = vpow.pop %v638
      %v640 = vmul.f32 %v575, 1.442695
      %v641 = vpow.pop %v640
      %v642 = vmul.f32 %v576, 1.442695
      %v643 = vpow.pop %v642
      %v644 = vmul.f32 %v577, 1.442695
      %v645 = vpow.pop %v644
      %v646 = vmul.f32 %v578, 1.442695
      %v647 = vpow.pop %v646
      %v648 = vmul.f32 %v579, 1.442695
      %v649 = vpow.pop %v648
      %v650 = vmul.f32 %v580, 1.442695
      %v651 = vpow.pop %v650
      %v652 = vmul.f32 %v581, 1.442695
      %v653 = vpow.pop %v652
      %v654 = vmul.f32 %v582, 1.442695
      %v655 = vpow.pop %v654
      %v656 = vmul.f32 %v583, 1.442695
      %v657 = vpow.pop %v656
      %v658 = vmul.f32 %v584, 1.442695
      %v659 = vpow.pop %v658
      %v660 = vmul.f32 %v585, 1.442695
      %v661 = vpow.pop %v660
      %v662 = vmul.f32 %v586, 1.442695
      %v663 = vpow.pop %v662
      %v664 = vmul.f32 %v587, 1.442695
      %v665 = vpow.pop %v664
      %v666 = vmul.f32 %v588, 1.442695
      %v667 = vpow.pop %v666
      %v668 = vmul.f32 %v589, 1.442695
      %v669 = vpow.pop %v668
      %v670 = vmul.f32 %v590, 1.442695
      %v671 = vpow.pop %v670
      %v672 = vmul.f32 %v591, 1.442695
      %v673 = vpow.pop %v672
      %v674 = vmul.f32 %v592, 1.442695
      %v675 = vpow.pop %v674
      %v676 = vmul.f32 %v593, 1.442695
      %v677 = vpow.pop %v676
      %v678 = vadd.f32 %v595, 1.0
      %v679 = vadd.f32 %v597, 1.0
      %v680 = vadd.f32 %v599, 1.0
      %v681 = vadd.f32 %v601, 1.0
      %v682 = vadd.f32 %v603, 1.0
      %v683 = vadd.f32 %v605, 1.0
      %v684 = vadd.f32 %v607, 1.0
      %v685 = vadd.f32 %v609, 1.0
      %v686 = vadd.f32 %v611, 1.0
      %v687 = vadd.f32 %v613, 1.0
      %v688 = vadd.f32 %v615, 1.0
      %v689 = vadd.f32 %v617, 1.0
      %v690 = vadd.f32 %v619, 1.0
      %v691 = vadd.f32 %v621, 1.0
      %v692 = vadd.f32 %v623, 1.0
      %v693 = vadd.f32 %v625, 1.0
      %v694 = vadd.f32 %v627, 1.0
      %v695 = vadd.f32 %v629, 1.0
      %v696 = vadd.f32 %v631, 1.0
      %v697 = vadd.f32 %v633, 1.0
      %v698 = vadd.f32 %v635, 1.0
      %v699 = vadd.f32 %v637, 1.0
      %v700 = vadd.f32 %v639, 1.0
      %v701 = vadd.f32 %v641, 1.0
      %v702 = vadd.f32 %v643, 1.0
      %v703 = vadd.f32 %v645, 1.0
      %v704 = vadd.f32 %v647, 1.0
      %v705 = vadd.f32 %v649, 1.0
      %v706 = vadd.f32 %v651, 1.0
      %v707 = vadd.f32 %v653, 1.0
      %v708 = vadd.f32 %v655, 1.0
      %v709 = vadd.f32 %v657, 1.0
      %v710 = vadd.f32 %v659, 1.0
      %v711 = vadd.f32 %v661, 1.0
      %v712 = vadd.f32 %v663, 1.0
      %v713 = vadd.f32 %v665, 1.0
      %v714 = vadd.f32 %v667, 1.0
      %v715 = vadd.f32 %v669, 1.0
      %v716 = vadd.f32 %v671, 1.0
      %v717 = vadd.f32 %v673, 1.0
      %v718 = vadd.f32 %v675, 1.0
      %v719 = vadd.f32 %v677, 1.0
      %v720 = vrcp.pop %v678
      %v721 = vmul.f32 1.0, %v720
      %v722 = vrcp.pop %v679
      %v723 = vmul.f32 1.0, %v722
      %v724 = vrcp.pop %v680
      %v725 = vmul.f32 1.0, %v724
      %v726 = vrcp.pop %v681
      %v727 = vmul.f32 1.0, %v726
      %v728 = vrcp.pop %v682
      %v729 = vmul.f32 1.0, %v728
      %v730 = vrcp.pop %v683
      %v731 = vmul.f32 1.0, %v730
      %v732 = vrcp.pop %v684
      %v733 = vmul.f32 1.0, %v732
      %v734 = vrcp.pop %v685
      %v735 = vmul.f32 1.0, %v734
      %v736 = vrcp.pop %v686
      %v737 = vmul.f32 1.0, %v736
      %v738 = vrcp.pop %v687
      %v739 = vmul.f32 1.0, %v738
      %v740 = vrcp.pop %v688
      %v741 = vmul.f32 1.0, %v740
      %v742 = vrcp.pop %v689
      %v743 = vmul.f32 1.0, %v742
      %v744 = vrcp.pop %v690
      %v745 = vmul.f32 1.0, %v744
      %v746 = vrcp.pop %v691
      %v747 = vmul.f32 1.0, %v746
      %v748 = vrcp.pop %v692
      %v749 = vmul.f32 1.0, %v748
      %v750 = vrcp.pop %v693
      %v751 = vmul.f32 1.0, %v750
      %v752 = vrcp.pop %v694
      %v753 = vmul.f32 1.0, %v752
      %v754 = vrcp.pop %v695
      %v755 = vmul.f32 1.0, %v754
      %v756 = vrcp.pop %v696
      %v757 = vmul.f32 1.0, %v756
      %v758 = vrcp.pop %v697
      %v759 = vmul.f32 1.0, %v758
      %v760 = vrcp.pop %v698
      %v761 = vmul.f32 1.0, %v760
      %v762 = vrcp.pop %v699
      %v763 = vmul.f32 1.0, %v762
      %v764 = vrcp.pop %v700
      %v765 = vmul.f32 1.0, %v764
      %v766 = vrcp.pop %v701
      %v767 = vmul.f32 1.0, %v766
      %v768 = vrcp.pop %v702
      %v769 = vmul.f32 1.0, %v768
      %v770 = vrcp.pop %v703
      %v771 = vmul.f32 1.0, %v770
      %v772 = vrcp.pop %v704
      %v773 = vmul.f32 1.0, %v772
      %v774 = vrcp.pop %v705
      %v775 = vmul.f32 1.0, %v774
      %v776 = vrcp.pop %v706
      %v777 = vmul.f32 1.0, %v776
      %v778 = vrcp.pop %v707
      %v779 = vmul.f32 1.0, %v778
      %v780 = vrcp.pop %v708
      %v781 = vmul.f32 1.0, %v780
      %v782 = vrcp.pop %v709
      %v783 = vmul.f32 1.0, %v782
      %v784 = vrcp.pop %v710
      %v785 = vmul.f32 1.0, %v784
      %v786 = vrcp.pop %v711
      %v787 = vmul.f32 1.0, %v786
      %v788 = vrcp.pop %v712
      %v789 = vmul.f32 1.0, %v788
      %v790 = vrcp.pop %v713
      %v791 = vmul.f32 1.0, %v790
      %v792 = vrcp.pop %v714
      %v793 = vmul.f32 1.0, %v792
      %v794 = vrcp.pop %v715
      %v795 = vmul.f32 1.0, %v794
      %v796 = vrcp.pop %v716
      %v797 = vmul.f32 1.0, %v796
      %v798 = vrcp.pop %v717
      %v799 = vmul.f32 1.0, %v798
      %v800 = vrcp.pop %v718
      %v801 = vmul.f32 1.0, %v800
      %v802 = vrcp.pop %v719
      %v803 = vmul.f32 1.0, %v802
      %v804 = vld [vmem:[%s241] sm:$0xff]
      %v805 = vld [vmem:[%s241 + $0x8] sm:$0xff]
      %v806 = vld [vmem:[%s241 + $0x10] sm:$0xff]
      %v807 = vld [vmem:[%s241 + $0x18] sm:$0xff]
      %v808 = vld [vmem:[%s241 + $0x20] sm:$0xff]
      %v809 = vld [vmem:[%s241 + $0x28] sm:$0xff]
      %v810 = vld [vmem:[%s241 + $0x30] sm:$0xff]
      %v811 = vld [vmem:[%s241 + $0x38] sm:$0xff]
      %v812 = vld [vmem:[%s241 + $0x40] sm:$0xff]
      %v813 = vld [vmem:[%s241 + $0x48] sm:$0xff]
      %v814 = vld [vmem:[%s241 + $0x50] sm:$0xff]
      %v815 = vld [vmem:[%s241 + $0x58] sm:$0xff]
      %v816 = vld [vmem:[%s241 + $0x60] sm:$0xff]
      %v817 = vld [vmem:[%s241 + $0x68] sm:$0xff]
      %v818 = vld [vmem:[%s241 + $0x70] sm:$0xff]
      %v819 = vld [vmem:[%s241 + $0x78] sm:$0xff]
      %v820 = vld [vmem:[%s241 + $0x80] sm:$0xff]
      %v821 = vld [vmem:[%s241 + $0x88] sm:$0xff]
      %v822 = vld [vmem:[%s241 + $0x90] sm:$0xff]
      %v823 = vld [vmem:[%s241 + $0x98] sm:$0xff]
      %v824 = vld [vmem:[%s241 + $0xa0] sm:$0xff]
      %v825 = vld [vmem:[%s241 + $0xa8] sm:$0xff]
      %v826 = vld [vmem:[%s241 + $0xb0] sm:$0xff]
      %v827 = vld [vmem:[%s241 + $0xb8] sm:$0xff]
      %v828 = vld [vmem:[%s241 + $0xc0] sm:$0xff]
      %v829 = vld [vmem:[%s241 + $0xc8] sm:$0xff]
      %v830 = vld [vmem:[%s241 + $0xd0] sm:$0xff]
      %v831 = vld [vmem:[%s241 + $0xd8] sm:$0xff]
      %v832 = vld [vmem:[%s241 + $0xe0] sm:$0xff]
      %v833 = vld [vmem:[%s241 + $0xe8] sm:$0xff]
      %v834 = vld [vmem:[%s241 + $0xf0] sm:$0xff]
      %v835 = vld [vmem:[%s241 + $0xf8] sm:$0xff]
      %v836 = vld [vmem:[%s241 + $0x100] sm:$0xff]
      %v837 = vld [vmem:[%s241 + $0x108] sm:$0xff]
      %v838 = vld [vmem:[%s241 + $0x110] sm:$0xff]
      %v839 = vld [vmem:[%s241 + $0x118] sm:$0xff]
      %v840 = vld [vmem:[%s241 + $0x120] sm:$0xff]
      %v841 = vld [vmem:[%s241 + $0x128] sm:$0xff]
      %v842 = vld [vmem:[%s241 + $0x130] sm:$0xff]
      %v843 = vld [vmem:[%s241 + $0x138] sm:$0xff]
      %v844 = vld [vmem:[%s241 + $0x140] sm:$0xff]
      %v845 = vld [vmem:[%s241 + $0x148] sm:$0xff]
      %v846 = vld [vmem:[%s241 + $0x150] sm:$0xff]
      %v847 = vld [vmem:[%s241 + $0x158] sm:$0xff]
      %v848 = vld [vmem:[%s241 + $0x160] sm:$0xff]
      %v849 = vld [vmem:[%s241 + $0x168] sm:$0xff]
      %v850 = vld [vmem:[%s241 + $0x170] sm:$0xff]
      %v851 = vld [vmem:[%s241 + $0x178] sm:$0xff]
      %v852 = vld [vmem:[%s241 + $0x180] sm:$0xff]
      %v853 = vld [vmem:[%s241 + $0x188] sm:$0xff]
      %v854 = vld [vmem:[%s241 + $0x190] sm:$0xff]
      %v855 = vld [vmem:[%s241 + $0x198] sm:$0xff]
      %v856 = vld [vmem:[%s241 + $0x1a0] sm:$0xff]
      %v857 = vld [vmem:[%s241 + $0x1a8] sm:$0xff]
      %v858 = vld [vmem:[%s241 + $0x1b0] sm:$0xff]
      %v859 = vld [vmem:[%s241 + $0x1b8] sm:$0xff]
      %v860 = vld [vmem:[%s241 + $0x1c0] sm:$0xff]
      %v861 = vld [vmem:[%s241 + $0x1c8] sm:$0xff]
      %v862 = vld [vmem:[%s241 + $0x1d0] sm:$0xff]
      %v863 = vld [vmem:[%s241 + $0x1d8] sm:$0xff]
      %v864 = vld [vmem:[%s241 + $0x1e0] sm:$0xff]
      %v865 = vld [vmem:[%s241 + $0x1e8] sm:$0xff]
      %v866 = vld [vmem:[%s241 + $0x1f0] sm:$0xff]
      %v867 = vld [vmem:[%s241 + $0x1f8] sm:$0xff]
      %v868 = vld [vmem:[%s241 + $0x200] sm:$0xff]
      %v869 = vld [vmem:[%s241 + $0x208] sm:$0xff]
      %v870 = vld [vmem:[%s241 + $0x210] sm:$0xff]
      %v871 = vld [vmem:[%s241 + $0x218] sm:$0xff]
      %v872 = vld [vmem:[%s241 + $0x220] sm:$0xff]
      %v873 = vld [vmem:[%s241 + $0x228] sm:$0xff]
      %v874 = vld [vmem:[%s241 + $0x230] sm:$0xff]
      %v875 = vld [vmem:[%s241 + $0x238] sm:$0xff]
      %v876 = vld [vmem:[%s241 + $0x240] sm:$0xff]
      %v877 = vld [vmem:[%s241 + $0x248] sm:$0xff]
      %v878 = vld [vmem:[%s241 + $0x250] sm:$0xff]
      %v879 = vld [vmem:[%s241 + $0x258] sm:$0xff]
      %v880 = vld [vmem:[%s241 + $0x260] sm:$0xff]
      %v881 = vld [vmem:[%s241 + $0x268] sm:$0xff]
      %v882 = vld [vmem:[%s241 + $0x270] sm:$0xff]
      %v883 = vld [vmem:[%s241 + $0x278] sm:$0xff]
      %v884 = vld [vmem:[%s241 + $0x280] sm:$0xff]
      %v885 = vld [vmem:[%s241 + $0x288] sm:$0xff]
      %v886 = vld [vmem:[%s241 + $0x290] sm:$0xff]
      %v887 = vld [vmem:[%s241 + $0x298] sm:$0xff]
      %889 = vset.pattern.permute.xlu0 0
      %890 = vperm.xlu0 %889, %v721
      %v891 = vpop.permute.xlu0 %890
      %894 = vset.pattern.permute.xlu0 0
      %895 = vperm.xlu0 %894, %v723
      %v896 = vpop.permute.xlu0 %895
      %899 = vset.pattern.permute.xlu0 0
      %900 = vperm.xlu0 %899, %v725
      %v901 = vpop.permute.xlu0 %900
      %904 = vset.pattern.permute.xlu0 0
      %905 = vperm.xlu0 %904, %v727
      %v906 = vpop.permute.xlu0 %905
      %909 = vset.pattern.permute.xlu0 0
      %910 = vperm.xlu0 %909, %v729
      %v911 = vpop.permute.xlu0 %910
      %914 = vset.pattern.permute.xlu0 0
      %915 = vperm.xlu0 %914, %v731
      %v916 = vpop.permute.xlu0 %915
      %919 = vset.pattern.permute.xlu0 0
      %920 = vperm.xlu0 %919, %v733
      %v921 = vpop.permute.xlu0 %920
      %924 = vset.pattern.permute.xlu0 0
      %925 = vperm.xlu0 %924, %v735
      %v926 = vpop.permute.xlu0 %925
      %929 = vset.pattern.permute.xlu0 0
      %930 = vperm.xlu0 %929, %v737
      %v931 = vpop.permute.xlu0 %930
      %934 = vset.pattern.permute.xlu0 0
      %935 = vperm.xlu0 %934, %v739
      %v936 = vpop.permute.xlu0 %935
      %939 = vset.pattern.permute.xlu0 0
      %940 = vperm.xlu0 %939, %v741
      %v941 = vpop.permute.xlu0 %940
      %944 = vset.pattern.permute.xlu0 0
      %945 = vperm.xlu0 %944, %v743
      %v946 = vpop.permute.xlu0 %945
      %949 = vset.pattern.permute.xlu0 0
      %950 = vperm.xlu0 %949, %v745
      %v951 = vpop.permute.xlu0 %950
      %954 = vset.pattern.permute.xlu0 0
      %955 = vperm.xlu0 %954, %v747
      %v956 = vpop.permute.xlu0 %955
      %959 = vset.pattern.permute.xlu0 0
      %960 = vperm.xlu0 %959, %v749
      %v961 = vpop.permute.xlu0 %960
      %964 = vset.pattern.permute.xlu0 0
      %965 = vperm.xlu0 %964, %v751
      %v966 = vpop.permute.xlu0 %965
      %969 = vset.pattern.permute.xlu0 0
      %970 = vperm.xlu0 %969, %v753
      %v971 = vpop.permute.xlu0 %970
      %974 = vset.pattern.permute.xlu0 0
      %975 = vperm.xlu0 %974, %v755
      %v976 = vpop.permute.xlu0 %975
      %979 = vset.pattern.permute.xlu0 0
      %980 = vperm.xlu0 %979, %v757
      %v981 = vpop.permute.xlu0 %980
      %984 = vset.pattern.permute.xlu0 0
      %985 = vperm.xlu0 %984, %v759
      %v986 = vpop.permute.xlu0 %985
      %989 = vset.pattern.permute.xlu0 0
      %990 = vperm.xlu0 %989, %v761
      %v991 = vpop.permute.xlu0 %990
      %994 = vset.pattern.permute.xlu0 0
      %995 = vperm.xlu0 %994, %v763
      %v996 = vpop.permute.xlu0 %995
      %999 = vset.pattern.permute.xlu0 0
      %1000 = vperm.xlu0 %999, %v765
      %v1001 = vpop.permute.xlu0 %1000
      %1004 = vset.pattern.permute.xlu0 0
      %1005 = vperm.xlu0 %1004, %v767
      %v1006 = vpop.permute.xlu0 %1005
      %1009 = vset.pattern.permute.xlu0 0
      %1010 = vperm.xlu0 %1009, %v769
      %v1011 = vpop.permute.xlu0 %1010
      %1014 = vset.pattern.permute.xlu0 0
      %1015 = vperm.xlu0 %1014, %v771
      %v1016 = vpop.permute.xlu0 %1015
      %1019 = vset.pattern.permute.xlu0 0
      %1020 = vperm.xlu0 %1019, %v773
      %v1021 = vpop.permute.xlu0 %1020
      %1024 = vset.pattern.permute.xlu0 0
      %1025 = vperm.xlu0 %1024, %v775
      %v1026 = vpop.permute.xlu0 %1025
      %1029 = vset.pattern.permute.xlu0 0
      %1030 = vperm.xlu0 %1029, %v777
      %v1031 = vpop.permute.xlu0 %1030
      %1034 = vset.pattern.permute.xlu0 0
      %1035 = vperm.xlu0 %1034, %v779
      %v1036 = vpop.permute.xlu0 %1035
      %1039 = vset.pattern.permute.xlu0 0
      %1040 = vperm.xlu0 %1039, %v781
      %v1041 = vpop.permute.xlu0 %1040
      %1044 = vset.pattern.permute.xlu0 0
      %1045 = vperm.xlu0 %1044, %v783
      %v1046 = vpop.permute.xlu0 %1045
      %1049 = vset.pattern.permute.xlu0 0
      %1050 = vperm.xlu0 %1049, %v785
      %v1051 = vpop.permute.xlu0 %1050
      %1054 = vset.pattern.permute.xlu0 0
      %1055 = vperm.xlu0 %1054, %v787
      %v1056 = vpop.permute.xlu0 %1055
      %1059 = vset.pattern.permute.xlu0 0
      %1060 = vperm.xlu0 %1059, %v789
      %v1061 = vpop.permute.xlu0 %1060
      %1064 = vset.pattern.permute.xlu0 0
      %1065 = vperm.xlu0 %1064, %v791
      %v1066 = vpop.permute.xlu0 %1065
      %1069 = vset.pattern.permute.xlu0 0
      %1070 = vperm.xlu0 %1069, %v793
      %v1071 = vpop.permute.xlu0 %1070
      %1074 = vset.pattern.permute.xlu0 0
      %1075 = vperm.xlu0 %1074, %v795
      %v1076 = vpop.permute.xlu0 %1075
      %1079 = vset.pattern.permute.xlu0 0
      %1080 = vperm.xlu0 %1079, %v797
      %v1081 = vpop.permute.xlu0 %1080
      %1084 = vset.pattern.permute.xlu0 0
      %1085 = vperm.xlu0 %1084, %v799
      %v1086 = vpop.permute.xlu0 %1085
      %1089 = vset.pattern.permute.xlu0 0
      %1090 = vperm.xlu0 %1089, %v801
      %v1091 = vpop.permute.xlu0 %1090
      %1094 = vset.pattern.permute.xlu0 0
      %1095 = vperm.xlu0 %1094, %v803
      %v1096 = vpop.permute.xlu0 %1095
      %v1098 = vmul.f32 %v804, %v891
      %v1099 = vmul.f32 %v805, %v891
      %v1100 = vmul.f32 %v806, %v896
      %v1101 = vmul.f32 %v807, %v896
      %v1102 = vmul.f32 %v808, %v901
      %v1103 = vmul.f32 %v809, %v901
      %v1104 = vmul.f32 %v810, %v906
      %v1105 = vmul.f32 %v811, %v906
      %v1106 = vmul.f32 %v812, %v911
      %v1107 = vmul.f32 %v813, %v911
      %v1108 = vmul.f32 %v814, %v916
      %v1109 = vmul.f32 %v815, %v916
      %v1110 = vmul.f32 %v816, %v921
      %v1111 = vmul.f32 %v817, %v921
      %v1112 = vmul.f32 %v818, %v926
      %v1113 = vmul.f32 %v819, %v926
      %v1114 = vmul.f32 %v820, %v931
      %v1115 = vmul.f32 %v821, %v931
      %v1116 = vmul.f32 %v822, %v936
      %v1117 = vmul.f32 %v823, %v936
      %v1118 = vmul.f32 %v824, %v941
      %v1119 = vmul.f32 %v825, %v941
      %v1120 = vmul.f32 %v826, %v946
      %v1121 = vmul.f32 %v827, %v946
      %v1122 = vmul.f32 %v828, %v951
      %v1123 = vmul.f32 %v829, %v951
      %v1124 = vmul.f32 %v830, %v956
      %v1125 = vmul.f32 %v831, %v956
      %v1126 = vmul.f32 %v832, %v961
      %v1127 = vmul.f32 %v833, %v961
      %v1128 = vmul.f32 %v834, %v966
      %v1129 = vmul.f32 %v835, %v966
      %v1130 = vmul.f32 %v836, %v971
      %v1131 = vmul.f32 %v837, %v971
      %v1132 = vmul.f32 %v838, %v976
      %v1133 = vmul.f32 %v839, %v976
      %v1134 = vmul.f32 %v840, %v981
      %v1135 = vmul.f32 %v841, %v981
      %v1136 = vmul.f32 %v842, %v986
      %v1137 = vmul.f32 %v843, %v986
      %v1138 = vmul.f32 %v844, %v991
      %v1139 = vmul.f32 %v845, %v991
      %v1140 = vmul.f32 %v846, %v996
      %v1141 = vmul.f32 %v847, %v996
      %v1142 = vmul.f32 %v848, %v1001
      %v1143 = vmul.f32 %v849, %v1001
      %v1144 = vmul.f32 %v850, %v1006
      %v1145 = vmul.f32 %v851, %v1006
      %v1146 = vmul.f32 %v852, %v1011
      %v1147 = vmul.f32 %v853, %v1011
      %v1148 = vmul.f32 %v854, %v1016
      %v1149 = vmul.f32 %v855, %v1016
      %v1150 = vmul.f32 %v856, %v1021
      %v1151 = vmul.f32 %v857, %v1021
      %v1152 = vmul.f32 %v858, %v1026
      %v1153 = vmul.f32 %v859, %v1026
      %v1154 = vmul.f32 %v860, %v1031
      %v1155 = vmul.f32 %v861, %v1031
      %v1156 = vmul.f32 %v862, %v1036
      %v1157 = vmul.f32 %v863, %v1036
      %v1158 = vmul.f32 %v864, %v1041
      %v1159 = vmul.f32 %v865, %v1041
      %v1160 = vmul.f32 %v866, %v1046
      %v1161 = vmul.f32 %v867, %v1046
      %v1162 = vmul.f32 %v868, %v1051
      %v1163 = vmul.f32 %v869, %v1051
      %v1164 = vmul.f32 %v870, %v1056
      %v1165 = vmul.f32 %v871, %v1056
      %v1166 = vmul.f32 %v872, %v1061
      %v1167 = vmul.f32 %v873, %v1061
      %v1168 = vmul.f32 %v874, %v1066
      %v1169 = vmul.f32 %v875, %v1066
      %v1170 = vmul.f32 %v876, %v1071
      %v1171 = vmul.f32 %v877, %v1071
      %v1172 = vmul.f32 %v878, %v1076
      %v1173 = vmul.f32 %v879, %v1076
      %v1174 = vmul.f32 %v880, %v1081
      %v1175 = vmul.f32 %v881, %v1081
      %v1176 = vmul.f32 %v882, %v1086
      %v1177 = vmul.f32 %v883, %v1086
      %v1178 = vmul.f32 %v884, %v1091
      %v1179 = vmul.f32 %v885, %v1091
      %v1180 = vmul.f32 %v886, %v1096
      %v1181 = vmul.f32 %v887, %v1096
      %1182 = vst [vmem:[%s248] sm:$0xff] %v1098
      %vm1183 = vcmask 556032
      %1184 = vst.msk [vmem:[%s248 + $0x8] sm:$0xff] %vm1183, %v1099
      %1185 = vst [vmem:[%s248 + $0x10] sm:$0xff] %v1100
      %1186 = vst.msk [vmem:[%s248 + $0x18] sm:$0xff] %vm1183, %v1101
      %1187 = vst [vmem:[%s248 + $0x20] sm:$0xff] %v1102
      %1188 = vst.msk [vmem:[%s248 + $0x28] sm:$0xff] %vm1183, %v1103
      %1189 = vst [vmem:[%s248 + $0x30] sm:$0xff] %v1104
      %1190 = vst.msk [vmem:[%s248 + $0x38] sm:$0xff] %vm1183, %v1105
      %1191 = vst [vmem:[%s248 + $0x40] sm:$0xff] %v1106
      %1192 = vst.msk [vmem:[%s248 + $0x48] sm:$0xff] %vm1183, %v1107
      %1193 = vst [vmem:[%s248 + $0x50] sm:$0xff] %v1108
      %1194 = vst.msk [vmem:[%s248 + $0x58] sm:$0xff] %vm1183, %v1109
      %1195 = vst [vmem:[%s248 + $0x60] sm:$0xff] %v1110
      %1196 = vst.msk [vmem:[%s248 + $0x68] sm:$0xff] %vm1183, %v1111
      %1197 = vst [vmem:[%s248 + $0x70] sm:$0xff] %v1112
      %1198 = vst.msk [vmem:[%s248 + $0x78] sm:$0xff] %vm1183, %v1113
      %1199 = vst [vmem:[%s248 + $0x80] sm:$0xff] %v1114
      %1200 = vst.msk [vmem:[%s248 + $0x88] sm:$0xff] %vm1183, %v1115
      %1201 = vst [vmem:[%s248 + $0x90] sm:$0xff] %v1116
      %1202 = vst.msk [vmem:[%s248 + $0x98] sm:$0xff] %vm1183, %v1117
      %1203 = vst [vmem:[%s248 + $0xa0] sm:$0xff] %v1118
      %1204 = vst.msk [vmem:[%s248 + $0xa8] sm:$0xff] %vm1183, %v1119
      %1205 = vst [vmem:[%s248 + $0xb0] sm:$0xff] %v1120
      %1206 = vst.msk [vmem:[%s248 + $0xb8] sm:$0xff] %vm1183, %v1121
      %1207 = vst [vmem:[%s248 + $0xc0] sm:$0xff] %v1122
      %1208 = vst.msk [vmem:[%s248 + $0xc8] sm:$0xff] %vm1183, %v1123
      %1209 = vst [vmem:[%s248 + $0xd0] sm:$0xff] %v1124
      %1210 = vst.msk [vmem:[%s248 + $0xd8] sm:$0xff] %vm1183, %v1125
      %1211 = vst [vmem:[%s248 + $0xe0] sm:$0xff] %v1126
      %1212 = vst.msk [vmem:[%s248 + $0xe8] sm:$0xff] %vm1183, %v1127
      %1213 = vst [vmem:[%s248 + $0xf0] sm:$0xff] %v1128
      %1214 = vst.msk [vmem:[%s248 + $0xf8] sm:$0xff] %vm1183, %v1129
      %1215 = vst [vmem:[%s248 + $0x100] sm:$0xff] %v1130
      %1216 = vst.msk [vmem:[%s248 + $0x108] sm:$0xff] %vm1183, %v1131
      %1217 = vst [vmem:[%s248 + $0x110] sm:$0xff] %v1132
      %1218 = vst.msk [vmem:[%s248 + $0x118] sm:$0xff] %vm1183, %v1133
      %1219 = vst [vmem:[%s248 + $0x120] sm:$0xff] %v1134
      %1220 = vst.msk [vmem:[%s248 + $0x128] sm:$0xff] %vm1183, %v1135
      %1221 = vst [vmem:[%s248 + $0x130] sm:$0xff] %v1136
      %1222 = vst.msk [vmem:[%s248 + $0x138] sm:$0xff] %vm1183, %v1137
      %1223 = vst [vmem:[%s248 + $0x140] sm:$0xff] %v1138
      %1224 = vst.msk [vmem:[%s248 + $0x148] sm:$0xff] %vm1183, %v1139
      %1225 = vst [vmem:[%s248 + $0x150] sm:$0xff] %v1140
      %1226 = vst.msk [vmem:[%s248 + $0x158] sm:$0xff] %vm1183, %v1141
      %1227 = vst [vmem:[%s248 + $0x160] sm:$0xff] %v1142
      %1228 = vst.msk [vmem:[%s248 + $0x168] sm:$0xff] %vm1183, %v1143
      %1229 = vst [vmem:[%s248 + $0x170] sm:$0xff] %v1144
      %1230 = vst.msk [vmem:[%s248 + $0x178] sm:$0xff] %vm1183, %v1145
      %1231 = vst [vmem:[%s248 + $0x180] sm:$0xff] %v1146
      %1232 = vst.msk [vmem:[%s248 + $0x188] sm:$0xff] %vm1183, %v1147
      %1233 = vst [vmem:[%s248 + $0x190] sm:$0xff] %v1148
      %1234 = vst.msk [vmem:[%s248 + $0x198] sm:$0xff] %vm1183, %v1149
      %1235 = vst [vmem:[%s248 + $0x1a0] sm:$0xff] %v1150
      %1236 = vst.msk [vmem:[%s248 + $0x1a8] sm:$0xff] %vm1183, %v1151
      %1237 = vst [vmem:[%s248 + $0x1b0] sm:$0xff] %v1152
      %1238 = vst.msk [vmem:[%s248 + $0x1b8] sm:$0xff] %vm1183, %v1153
      %1239 = vst [vmem:[%s248 + $0x1c0] sm:$0xff] %v1154
      %1240 = vst.msk [vmem:[%s248 + $0x1c8] sm:$0xff] %vm1183, %v1155
      %1241 = vst [vmem:[%s248 + $0x1d0] sm:$0xff] %v1156
      %1242 = vst.msk [vmem:[%s248 + $0x1d8] sm:$0xff] %vm1183, %v1157
      %1243 = vst [vmem:[%s248 + $0x1e0] sm:$0xff] %v1158
      %1244 = vst.msk [vmem:[%s248 + $0x1e8] sm:$0xff] %vm1183, %v1159
      %1245 = vst [vmem:[%s248 + $0x1f0] sm:$0xff] %v1160
      %1246 = vst.msk [vmem:[%s248 + $0x1f8] sm:$0xff] %vm1183, %v1161
      %1247 = vst [vmem:[%s248 + $0x200] sm:$0xff] %v1162
      %1248 = vst.msk [vmem:[%s248 + $0x208] sm:$0xff] %vm1183, %v1163
      %1249 = vst [vmem:[%s248 + $0x210] sm:$0xff] %v1164
      %1250 = vst.msk [vmem:[%s248 + $0x218] sm:$0xff] %vm1183, %v1165
      %1251 = vst [vmem:[%s248 + $0x220] sm:$0xff] %v1166
      %1252 = vst.msk [vmem:[%s248 + $0x228] sm:$0xff] %vm1183, %v1167
      %1253 = vst [vmem:[%s248 + $0x230] sm:$0xff] %v1168
      %1254 = vst.msk [vmem:[%s248 + $0x238] sm:$0xff] %vm1183, %v1169
      %1255 = vst [vmem:[%s248 + $0x240] sm:$0xff] %v1170
      %1256 = vst.msk [vmem:[%s248 + $0x248] sm:$0xff] %vm1183, %v1171
      %1257 = vst [vmem:[%s248 + $0x250] sm:$0xff] %v1172
      %1258 = vst.msk [vmem:[%s248 + $0x258] sm:$0xff] %vm1183, %v1173
      %1259 = vst [vmem:[%s248 + $0x260] sm:$0xff] %v1174
      %1260 = vst.msk [vmem:[%s248 + $0x268] sm:$0xff] %vm1183, %v1175
      %1261 = vst [vmem:[%s248 + $0x270] sm:$0xff] %v1176
      %1262 = vst.msk [vmem:[%s248 + $0x278] sm:$0xff] %vm1183, %v1177
      %1263 = vst [vmem:[%s248 + $0x280] sm:$0xff] %v1178
      %1264 = vst.msk [vmem:[%s248 + $0x288] sm:$0xff] %vm1183, %v1179
      %1265 = vst [vmem:[%s248 + $0x290] sm:$0xff] %v1180
      %1266 = vst.msk [vmem:[%s248 + $0x298] sm:$0xff] %vm1183, %v1181
      %s1267 = smul.u32 42, %s15
      %p1268 = scmp.lt.s32.totalorder %s1267, 167
      %s1269 = scalar_select %p1268, %s1267, 167
      %s1270 = smul.addr %s1269, 2
      %s1271 = smul.addr %s1270, 8
      %s1272 = scalar_lea.vmem %s4, %s1271
      // Predicated region
      $region37: #{tpu_custom_call.1} parent=35 // pred_check
        %p1273 = pneg %p132
      $region38: #{tpu_custom_call.1} parent=35 // pred_check_branch
        %1275 = sbr.rel (%p1273) target = $region40
      $region39: #{tpu_custom_call.1} parent=35 // pred_region
        %s1276 = smul.u32 42, %s15
      $region40: #{tpu_custom_call.1} parent=35 // pred_fallthru
        _
    $region36: #{tpu_custom_call.1} parent=5 // pred_fallthru
      _
    %p1277 = scmp.le.s32.totalorder 2, %s10
    // Predicated region
    $region41: #{tpu_custom_call.1} parent=5 // pred_check
      %p1278 = pneg %p1277
    $region42: #{tpu_custom_call.1} parent=5 // pred_check_branch
      %1280 = sbr.rel (%p1278) target = $region44
    $region43: #{tpu_custom_call.1} parent=5 // pred_region
      %s1281 = ssub.s32 %s10, 2
      // Predicated region
      $region45: #{tpu_custom_call.1} parent=43 // pred_check
        %p1282 = pneg %p138
      $region46: #{tpu_custom_call.1} parent=43 // pred_check_branch
        %1284 = sbr.rel (%p1282) target = $region48
      $region47: #{tpu_custom_call.1} parent=43 // pred_region
        %s1285 = smul.u32 42, %s16
        %p1286 = scmp.lt.s32.totalorder %s1285, 167
        %s1287 = scalar_select %p1286, %s1285, 167
        %s1288 = smul.addr %s1287, 2
        %s1289 = smul.addr %s1288, 8
        %s1290 = scalar_lea.vmem %s4, %s1289
      $region48: #{tpu_custom_call.1} parent=43 // pred_fallthru
        _
    $region44: #{tpu_custom_call.1} parent=5 // pred_fallthru
      _
  $region6: #{tpu_custom_call.1} parent=0 // loop_footer
    %s14 = sadd.s32 1, %s10
  $region7: #{tpu_custom_call.1} parent=0 // loop_footer_branch
    %9 = sbr.rel target = $region3
  $region8: #{tpu_custom_call.1} parent=0 // loop_exit
    _

</llo_original>
